<compile_context>
chip_gen: v5e
topology: v5e:2x2
jax: 0.10.0
libtpu: 0.0.40
codegen_flags: <defaults>
</compile_context>

<pallas_src>
import jax
import jax.numpy as jnp
from jax.experimental import pallas as pl
from jax.experimental.pallas import tpu as pltpu

EPS = 1e-5
LANE = 128  # lane width; all kernel outputs are padded to this in the last dim


# ----------------------------------------------------------------------------
# Fused kernel: SAGE1 -> ReLU -> BN -> SAGE2 -> ReLU -> BN -> global_max_pool
#               and  gexpr @ W_eff + b_eff -> BN   (cell branch)
# ----------------------------------------------------------------------------
def _bn_train(h, gamma, beta, n_valid, row_mask=None):
    """BatchNorm1d, training-mode biased statistics over axis 0.

    If row_mask (rows, 1) is given, statistics are computed over the masked
    (true) rows only, with n_valid the true row count.  Padded rows still get
    normalized output (garbage) — they are sliced off in the wrapper."""
    inv_n = 1.0 / jnp.asarray(n_valid, jnp.float32)
    if row_mask is None:
        mean = jnp.sum(h, axis=0, keepdims=True) * inv_n
        diff = h - mean
        var = jnp.sum(diff * diff, axis=0, keepdims=True) * inv_n
    else:
        mean = jnp.sum(h * row_mask, axis=0, keepdims=True) * inv_n
        diff = (h - mean) * row_mask
        var = jnp.sum(diff * diff, axis=0, keepdims=True) * inv_n
    return gamma * (h - mean) * jax.lax.rsqrt(var + EPS) + beta


def _bio_encoder_kernel(bt_ref, off_ref, x_ref, a_ref,
                        wl1_ref, wr1_ref, bl1_ref, g1_ref, be1_ref,
                        w2_ref, b2_ref, g2_ref, be2_ref,
                        gex_ref, weff_ref, beff_ref, gc_ref, bc_ref,
                        odrug_ref, ocell_ref, h2_ref):
    f32, bf16 = jnp.float32, jnp.bfloat16

    # ------------------------------ drug branch -----------------------------
    x = x_ref[...]                                   # (N, F)  bf16
    a = a_ref[...]                                   # (N, N)  bf16 mean-aggr
    n_nodes = x.shape[0]

    # SAGEConv1 = lin_l(mean_nbrs) + lin_r(x): two accumulated matmuls (no
    # lane-misaligned 16+16 concat), then ReLU + BatchNorm1d(128).
    agg1 = jnp.dot(a, x, preferred_element_type=f32)
    h1 = (jnp.dot(agg1.astype(bf16), wl1_ref[...], preferred_element_type=f32)
          + jnp.dot(x, wr1_ref[...], preferred_element_type=f32)
          + bl1_ref[...])
    h1 = _bn_train(jnp.maximum(h1, 0.0), g1_ref[...], be1_ref[...], n_nodes)
    h1b = h1.astype(bf16)

    # SAGEConv2: 128+128 lane-aligned concat, one K=256 matmul (output lanes
    # padded to 128), then ReLU + BatchNorm1d(output).
    agg2 = jnp.dot(a, h1b, preferred_element_type=f32)
    h2 = jnp.dot(jnp.concatenate([agg2.astype(bf16), h1b], axis=1),
                 w2_ref[...], preferred_element_type=f32) + b2_ref[...]
    h2 = _bn_train(jnp.maximum(h2, 0.0), g2_ref[...], be2_ref[...], n_nodes)
    h2_ref[...] = h2                                 # stage for dynamic rows

    # global_max_pool over CONTIGUOUS node segments (ibatch sorted, PyG Batch
    # contract).  Total O(N * LANE) compare work instead of one full pass per
    # graph.  Rows g >= num_graphs have empty segments and stay -inf; the
    # wrapper slices them off — never consume the padded slab directly.
    @pl.loop(0, odrug_ref.shape[0])
    def _(g):
        start = off_ref[g]
        stop = off_ref[g + 1]

        def row_max(i, acc):
            return jnp.maximum(acc, h2_ref[pl.ds(i, 1), :])

        pooled = jax.lax.fori_loop(
            start, stop, row_max,
            jnp.full((1, odrug_ref.shape[1]), -jnp.inf, f32))
        odrug_ref[pl.ds(g, 1), :] = pooled

    # --------------------------- cell-line branch ---------------------------
    # Folded Conv1d(1->3, k=16) + flatten + Linear(1908, 100) -> one matmul
    # (contraction dim zero-padded to a multiple of 128), then BatchNorm1d(100)
    # computed over the true rows only (padded rows masked out of the stats).
    bt = bt_ref[0]                                   # true cell batch size
    acc = jnp.dot(gex_ref[...], weff_ref[...],
                  preferred_element_type=f32) + beff_ref[...]
    row = jax.lax.broadcasted_iota(jnp.int32, (acc.shape[0], 1), 0)
    row_mask = (row < bt).astype(f32)
    ocell_ref[...] = _bn_train(acc, gc_ref[...], bc_ref[...], bt, row_mask)


# ----------------------------------------------------------------------------
# Wrapper-side preprocessing
# ----------------------------------------------------------------------------
def _round_up(n, m):
    return -(-n // m) * m


def _pad_lanes(x, width=LANE):
    pad = width - x.shape[-1]
    if pad <= 0:
        return x
    return jnp.pad(x, [(0, 0)] * (x.ndim - 1) + [(0, pad)])


def _fold_conv_fc(w_conv, b_conv, w_fc, b_fc, in_len):
    """Fold Conv1d(1->C, k) -> flatten -> Linear(C*conv_len, O) into a single
    (in_len, O) affine map.  Valid because forward() has no nonlinearity
    between the conv and the linear layer."""
    c_ch, k_size = w_conv.shape
    conv_len = w_fc.shape[1]
    w_eff = jnp.zeros((in_len, w_fc.shape[2]), jnp.float32)
    for c in range(c_ch):
        for k in range(k_size):
            w_eff = w_eff.at[k:k + conv_len].add(w_conv[c, k] * w_fc[c])
    b_eff = b_fc + jnp.sum(b_conv[:, None] * jnp.sum(w_fc, axis=1), axis=0)
    return w_eff, b_eff


def bio_encoder_forward(p, drug_feature, a_mean, ibatch, gexpr, num_graphs):
    n_nodes, dim_drug = drug_feature.shape
    b_true, l_gene = gexpr.shape
    output = p["wl2"].shape[1]
    cell_dim = p["bfc"].shape[0]
    bf16 = jnp.bfloat16

    g_pad = max(8, _round_up(num_graphs, 8))   # sublane-pad #graphs
    b_pad = max(8, _round_up(b_true, 8))       # sublane-pad cell batch
    k_pad = _round_up(l_gene, LANE)            # gexpr contraction dim -> 768

    # SAGE layer-1 weights stay unmerged (two matmuls in-kernel); layer-2
    # weights merged (lin_l over lin_r) and lane-padded to 128.  MXU operands
    # in bf16, BN params in f32.
    wl1 = p["wl1"].astype(bf16)
    wr1 = p["wr1"].astype(bf16)
    w2 = _pad_lanes(jnp.concatenate([p["wl2"], p["wr2"]], axis=0)).astype(bf16)
    b2 = _pad_lanes(p["bl2"][None, :])
    g2 = _pad_lanes(p["g2"][None, :])
    be2 = _pad_lanes(p["b2"][None, :])

    # fold conv + flatten + fc into one affine map; K-pad to 768, lane-pad 128
    w_eff, b_eff = _fold_conv_fc(p["wconv"], p["bconv"], p["wfc"], p["bfc"],
                                 l_gene)
    w_eff = jnp.pad(_pad_lanes(w_eff),
                    ((0, k_pad - l_gene), (0, 0))).astype(bf16)
    b_eff = _pad_lanes(b_eff[None, :])
    gc = _pad_lanes(p["gc"][None, :])
    bc = _pad_lanes(p["bc"][None, :])

    gex_pad = jnp.pad(gexpr, ((0, b_pad - b_true),
                              (0, k_pad - l_gene))).astype(bf16)

    # SMEM scalars: true cell batch size + contiguous per-graph row offsets
    # (ibatch is sorted per the PyG Batch contract).
    bt = jnp.asarray([b_true], jnp.int32)
    seg_off = jnp.searchsorted(
        ibatch.astype(jnp.int32),
        jnp.arange(g_pad + 1, dtype=jnp.int32), side="left").astype(jnp.int32)

    args = (bt, seg_off,
            drug_feature.astype(bf16), a_mean.astype(bf16),
            wl1, wr1, p["bl1"][None, :], p["g1"][None, :], p["b1"][None, :],
            w2, b2, g2, be2,
            gex_pad, w_eff, b_eff, gc, bc)

    smem = pl.BlockSpec(memory_space=pltpu.MemorySpace.SMEM)
    vmem = pl.BlockSpec(memory_space=pltpu.MemorySpace.VMEM)
    in_specs = [smem, smem] + [vmem] * (len(args) - 2)

    flops = 2 * (n_nodes * n_nodes * dim_drug          # A @ X
                 + 2 * n_nodes * dim_drug * 128        # agg1@Wl1 + x@Wr1
                 + n_nodes * n_nodes * 128              # A @ h1
                 + n_nodes * 256 * LANE                 # cat2 @ W2
                 + b_pad * k_pad * LANE)                # gexpr @ W_eff
    bytes_accessed = (sum(int(a_.size) * a_.dtype.itemsize for a_ in args)
                      + 4 * (g_pad + b_pad) * LANE)

    # VMEM limit derived from physical capacity: ~96 MiB on v5e/v6e (128 MiB
    # phys), ~48 MiB on v7x (64 MiB phys); falls back to 48 MiB.
    try:
        vmem_cap = int(pltpu.get_tpu_info().vmem_capacity_bytes)
    except Exception:
        vmem_cap = 64 * 1024 * 1024
    vmem_limit = min(max(32 * 1024 * 1024, (3 * vmem_cap) // 4),
                     112 * 1024 * 1024)

    out_drug_pad, out_cell_pad = pl.pallas_call(
        _bio_encoder_kernel,
        out_shape=(jax.ShapeDtypeStruct((g_pad, LANE), jnp.float32),
                   jax.ShapeDtypeStruct((b_pad, LANE), jnp.float32)),
        in_specs=in_specs,
        out_specs=(vmem, vmem),
        scratch_shapes=[pltpu.VMEM((n_nodes, LANE), jnp.float32)],
        cost_estimate=pl.CostEstimate(flops=flops, transcendentals=0,
                                      bytes_accessed=bytes_accessed),
        compiler_params=pltpu.CompilerParams(vmem_limit_bytes=vmem_limit),
    )(*args)

    # slice padded lanes / rows back to the true module shapes
    return out_drug_pad[:num_graphs, :output], out_cell_pad[:b_true, :cell_dim]


# ----------------------------------------------------------------------------
# Parameter construction (deterministic, synthetic)
# ----------------------------------------------------------------------------
def _xavier_uniform(key, shape):
    fan_in, fan_out = shape
    bound = (6.0 / (fan_in + fan_out)) ** 0.5
    return jax.random.uniform(key, shape, jnp.float32, -bound, bound)


def init_bio_encoder_params(key, dim_drug, output):
    ks = jax.random.split(key, 8)
    conv_len = 636  # 651 - 16 + 1, fixed by the module (fc_cell11 expects 3*636)
    return dict(
        # SAGEConv(dim_drug, 128): lin_l (neighbors, with bias) + lin_r (root)
        wl1=_xavier_uniform(ks[0], (dim_drug, 128)),
        wr1=_xavier_uniform(ks[1], (dim_drug, 128)),
        bl1=jnp.zeros((128,), jnp.float32),
        g1=jnp.ones((128,), jnp.float32),
        b1=jnp.zeros((128,), jnp.float32),
        # SAGEConv(128, output)
        wl2=_xavier_uniform(ks[2], (128, output)),
        wr2=_xavier_uniform(ks[3], (128, output)),
        bl2=jnp.zeros((output,), jnp.float32),
        g2=jnp.ones((output,), jnp.float32),
        b2=jnp.zeros((output,), jnp.float32),
        # Conv1d(1, 3, kernel_size=16): weight (3, 1, 16) stored squeezed (3, 16)
        wconv=jax.random.uniform(ks[4], (3, 16), jnp.float32, -0.25, 0.25),
        bconv=jax.random.uniform(ks[5], (3,), jnp.float32, -0.25, 0.25),
        # fc_cell11: Linear(3*636, 100) weight, transposed + split per channel
        wfc=_xavier_uniform(ks[6], (3 * conv_len, 100)).reshape(3, conv_len, 100),
        bfc=jnp.zeros((100,), jnp.float32),
        gc=jnp.ones((100,), jnp.float32),
        bc=jnp.zeros((100,), jnp.float32),
        # TODO(synk): fc_cell (Linear(113, output)) exists in __init__ but is
        # never used in forward(), so it is intentionally omitted.
    )


# ----------------------------------------------------------------------------
# Pure-JAX f32 reference (same math, un-fused) for a correctness check
# ----------------------------------------------------------------------------
def _reference_forward(p, drug_feature, a_mean, ibatch, gexpr, num_graphs):
    def bn(h, gamma, beta):
        m = jnp.mean(h, axis=0, keepdims=True)
        v = jnp.mean((h - m) ** 2, axis=0, keepdims=True)
        return gamma * (h - m) / jnp.sqrt(v + EPS) + beta

    agg = a_mean @ drug_feature
    h = jnp.maximum(agg @ p["wl1"] + drug_feature @ p["wr1"] + p["bl1"], 0.0)
    h = bn(h, p["g1"], p["b1"])
    agg = a_mean @ h
    h = jnp.maximum(agg @ p["wl2"] + h @ p["wr2"] + p["bl2"], 0.0)
    h = bn(h, p["g2"], p["b2"])
    x_drug = jnp.stack([
        jnp.max(jnp.where((ibatch == g)[:, None], h, -jnp.inf), axis=0)
        for g in range(num_graphs)])

    conv_len = gexpr.shape[1] - p["wconv"].shape[1] + 1
    chans = []
    for c in range(p["wconv"].shape[0]):
        acc = jnp.zeros((gexpr.shape[0], conv_len), jnp.float32)
        for k in range(p["wconv"].shape[1]):
            acc = acc + p["wconv"][c, k] * gexpr[:, k:k + conv_len]
        chans.append(acc + p["bconv"][c])
    flat = jnp.concatenate(chans, axis=1)
    cell = flat @ p["wfc"].reshape(-1, p["wfc"].shape[-1]) + p["bfc"]
    return x_drug, bn(cell, p["gc"], p["bc"])


if __name__ == "__main__":
    key = jax.random.PRNGKey(0)
    k_feat, k_adj, k_gexpr, k_params = jax.random.split(key, 4)

    dim_drug = 16          # input drug-atom feature dim
    dim_cellline = 651     # gene-expression length (=> conv output length 636)
    output = 32            # SAGEConv2 output dim
    n_nodes = 16           # total drug-graph nodes in the batch
    num_graphs = 2         # drugs in the batch
    batch_cell = 4         # cell lines in the batch

    drug_feature = jax.random.normal(k_feat, (n_nodes, dim_drug), jnp.float32)

    # random undirected drug graph -> dense mean-aggregation matrix (glue)
    rand = jax.random.uniform(k_adj, (n_nodes, n_nodes))
    adj = jnp.logical_or(rand < 0.3, (rand < 0.3).T).astype(jnp.float32)
    adj = adj * (1.0 - jnp.eye(n_nodes, dtype=jnp.float32))
    deg = jnp.maximum(jnp.sum(adj, axis=1, keepdims=True), 1.0)
    a_mean = adj / deg

    # node -> graph assignment (sorted, PyG Batch contract)
    ibatch = jnp.concatenate([
        jnp.zeros((n_nodes // 2,), jnp.int32),
        jnp.ones((n_nodes - n_nodes // 2,), jnp.int32)])

    gexpr_data = jax.random.normal(k_gexpr, (batch_cell, dim_cellline),
                                   jnp.float32)

    params = init_bio_encoder_params(k_params, dim_drug, output)

    fwd = jax.jit(bio_encoder_forward, static_argnames=("num_graphs",))
    x_drug, x_cellline = fwd(params, drug_feature, a_mean, ibatch, gexpr_data,
                             num_graphs=num_graphs)
    jax.block_until_ready((x_drug, x_cellline))

    assert x_drug.shape == (num_graphs, output)
    assert x_cellline.shape == (batch_cell, 100)

    # correctness check against the un-fused pure-f32 JAX reference; the
    # kernel runs its matmuls with bf16 operands (MXU-native), so the
    # tolerance is loosened accordingly.
    ref_drug, ref_cell = _reference_forward(params, drug_feature, a_mean,
                                            ibatch, gexpr_data, num_graphs)
    assert float(jnp.max(jnp.abs(x_drug - ref_drug))) < 5e-2
    assert float(jnp.max(jnp.abs(x_cellline - ref_cell))) < 5e-2

    print("KERNEL_OK")
</pallas_src>

<mosaic_0001>
module attributes {stable_mosaic.version = 11 : i64} {
  func.func @_bio_encoder_kernel(%arg0: memref<1xi32, #tpu.memory_space<smem>>, %arg1: memref<9xi32, #tpu.memory_space<smem>>, %arg2: memref<16x16xbf16, #tpu.memory_space<vmem>>, %arg3: memref<16x16xbf16, #tpu.memory_space<vmem>>, %arg4: memref<16x128xbf16, #tpu.memory_space<vmem>>, %arg5: memref<16x128xbf16, #tpu.memory_space<vmem>>, %arg6: memref<1x128xf32, #tpu.memory_space<vmem>>, %arg7: memref<1x128xf32, #tpu.memory_space<vmem>>, %arg8: memref<1x128xf32, #tpu.memory_space<vmem>>, %arg9: memref<256x128xbf16, #tpu.memory_space<vmem>>, %arg10: memref<1x128xf32, #tpu.memory_space<vmem>>, %arg11: memref<1x128xf32, #tpu.memory_space<vmem>>, %arg12: memref<1x128xf32, #tpu.memory_space<vmem>>, %arg13: memref<8x768xbf16, #tpu.memory_space<vmem>>, %arg14: memref<768x128xbf16, #tpu.memory_space<vmem>>, %arg15: memref<1x128xf32, #tpu.memory_space<vmem>>, %arg16: memref<1x128xf32, #tpu.memory_space<vmem>>, %arg17: memref<1x128xf32, #tpu.memory_space<vmem>>, %arg18: memref<8x128xf32, #tpu.memory_space<vmem>>, %arg19: memref<8x128xf32, #tpu.memory_space<vmem>>, %arg20: memref<16x128xf32, #tpu.memory_space<vmem>>) attributes {dimension_semantics = [], scalar_prefetch = 0 : i64, scratch_operands = 1 : i64, tpu.core_type = #tpu.core_type<tc>} {
    %c0 = arith.constant 0 : index
    %c0_0 = arith.constant 0 : index
    %0 = vector.load %arg2[%c0, %c0_0] : memref<16x16xbf16, #tpu.memory_space<vmem>>, vector<16x16xbf16>
    %c0_1 = arith.constant 0 : index
    %c0_2 = arith.constant 0 : index
    %1 = vector.load %arg3[%c0_1, %c0_2] : memref<16x16xbf16, #tpu.memory_space<vmem>>, vector<16x16xbf16>
    %cst = arith.constant dense<0.000000e+00> : vector<16x16xf32>
    %2 = tpu.matmul %1, %0, %cst {dimension_numbers = #tpu.dot_dimension_numbers<[1], [0], [0], [1], [0, 0, 1, 1], [], []>} : vector<16x16xbf16>, vector<16x16xbf16>, vector<16x16xf32> -> vector<16x16xf32>
    %3 = arith.truncf %2 : vector<16x16xf32> to vector<16x16xbf16>
    %c0_3 = arith.constant 0 : index
    %c0_4 = arith.constant 0 : index
    %4 = vector.load %arg4[%c0_3, %c0_4] : memref<16x128xbf16, #tpu.memory_space<vmem>>, vector<16x128xbf16>
    %cst_5 = arith.constant dense<0.000000e+00> : vector<16x128xf32>
    %5 = tpu.matmul %3, %4, %cst_5 {dimension_numbers = #tpu.dot_dimension_numbers<[1], [0], [0], [1], [0, 0, 1, 1], [], []>} : vector<16x16xbf16>, vector<16x128xbf16>, vector<16x128xf32> -> vector<16x128xf32>
    %c0_6 = arith.constant 0 : index
    %c0_7 = arith.constant 0 : index
    %6 = vector.load %arg5[%c0_6, %c0_7] : memref<16x128xbf16, #tpu.memory_space<vmem>>, vector<16x128xbf16>
    %cst_8 = arith.constant dense<0.000000e+00> : vector<16x128xf32>
    %7 = tpu.matmul %0, %6, %cst_8 {dimension_numbers = #tpu.dot_dimension_numbers<[1], [0], [0], [1], [0, 0, 1, 1], [], []>} : vector<16x16xbf16>, vector<16x128xbf16>, vector<16x128xf32> -> vector<16x128xf32>
    %8 = arith.addf %5, %7 : vector<16x128xf32>
    %c0_9 = arith.constant 0 : index
    %c0_10 = arith.constant 0 : index
    %9 = vector.load %arg6[%c0_9, %c0_10] : memref<1x128xf32, #tpu.memory_space<vmem>>, vector<1x128xf32>
    %10 = vector.broadcast %9 : vector<1x128xf32> to vector<16x128xf32>
    %11 = arith.addf %8, %10 : vector<16x128xf32>
    %cst_11 = arith.constant 0.000000e+00 : f32
    %12 = vector.broadcast %cst_11 : f32 to vector<16x128xf32>
    %13 = arith.maximumf %11, %12 : vector<16x128xf32>
    %c0_12 = arith.constant 0 : index
    %c0_13 = arith.constant 0 : index
    %14 = vector.load %arg7[%c0_12, %c0_13] : memref<1x128xf32, #tpu.memory_space<vmem>>, vector<1x128xf32>
    %c0_14 = arith.constant 0 : index
    %c0_15 = arith.constant 0 : index
    %15 = vector.load %arg8[%c0_14, %c0_15] : memref<1x128xf32, #tpu.memory_space<vmem>>, vector<1x128xf32>
    %cst_16 = arith.constant 1.000000e+00 : f32
    %cst_17 = arith.constant 1.600000e+01 : f32
    %16 = arith.divf %cst_16, %cst_17 : f32
    %cst_18 = arith.constant dense<0.000000e+00> : vector<128xf32>
    %17 = vector.multi_reduction <add>, %13, %cst_18 [0] : vector<16x128xf32> to vector<128xf32>
    %18 = vector.shape_cast %17 : vector<128xf32> to vector<1x128xf32>
    %19 = vector.broadcast %16 : f32 to vector<1x128xf32>
    %20 = arith.mulf %18, %19 : vector<1x128xf32>
    %21 = vector.broadcast %20 : vector<1x128xf32> to vector<16x128xf32>
    %22 = arith.subf %13, %21 : vector<16x128xf32>
    %23 = arith.mulf %22, %22 : vector<16x128xf32>
    %cst_19 = arith.constant dense<0.000000e+00> : vector<128xf32>
    %24 = vector.multi_reduction <add>, %23, %cst_19 [0] : vector<16x128xf32> to vector<128xf32>
    %25 = vector.shape_cast %24 : vector<128xf32> to vector<1x128xf32>
    %26 = vector.broadcast %16 : f32 to vector<1x128xf32>
    %27 = arith.mulf %25, %26 : vector<1x128xf32>
    %28 = vector.broadcast %20 : vector<1x128xf32> to vector<16x128xf32>
    %29 = arith.subf %13, %28 : vector<16x128xf32>
    %30 = vector.broadcast %14 : vector<1x128xf32> to vector<16x128xf32>
    %31 = arith.mulf %30, %29 : vector<16x128xf32>
    %cst_20 = arith.constant 9.99999974E-6 : f32
    %32 = vector.broadcast %cst_20 : f32 to vector<1x128xf32>
    %33 = arith.addf %27, %32 : vector<1x128xf32>
    %34 = math.rsqrt %33 : vector<1x128xf32>
    %35 = vector.broadcast %34 : vector<1x128xf32> to vector<16x128xf32>
    %36 = arith.mulf %31, %35 : vector<16x128xf32>
    %37 = vector.broadcast %15 : vector<1x128xf32> to vector<16x128xf32>
    %38 = arith.addf %36, %37 : vector<16x128xf32>
    %39 = arith.truncf %38 : vector<16x128xf32> to vector<16x128xbf16>
    %cst_21 = arith.constant dense<0.000000e+00> : vector<16x128xf32>
    %40 = tpu.matmul %1, %39, %cst_21 {dimension_numbers = #tpu.dot_dimension_numbers<[1], [0], [0], [1], [0, 0, 1, 1], [], []>} : vector<16x16xbf16>, vector<16x128xbf16>, vector<16x128xf32> -> vector<16x128xf32>
    %41 = arith.truncf %40 : vector<16x128xf32> to vector<16x128xbf16>
    %42 = tpu.concatenate %41, %39 in 1 : vector<16x128xbf16>, vector<16x128xbf16> -> vector<16x256xbf16>
    %c0_22 = arith.constant 0 : index
    %c0_23 = arith.constant 0 : index
    %43 = vector.load %arg9[%c0_22, %c0_23] : memref<256x128xbf16, #tpu.memory_space<vmem>>, vector<256x128xbf16>
    %cst_24 = arith.constant dense<0.000000e+00> : vector<16x128xf32>
    %44 = tpu.matmul %42, %43, %cst_24 {dimension_numbers = #tpu.dot_dimension_numbers<[1], [0], [0], [1], [0, 0, 1, 1], [], []>} : vector<16x256xbf16>, vector<256x128xbf16>, vector<16x128xf32> -> vector<16x128xf32>
    %c0_25 = arith.constant 0 : index
    %c0_26 = arith.constant 0 : index
    %45 = vector.load %arg10[%c0_25, %c0_26] : memref<1x128xf32, #tpu.memory_space<vmem>>, vector<1x128xf32>
    %46 = vector.broadcast %45 : vector<1x128xf32> to vector<16x128xf32>
    %47 = arith.addf %44, %46 : vector<16x128xf32>
    %cst_27 = arith.constant 0.000000e+00 : f32
    %48 = vector.broadcast %cst_27 : f32 to vector<16x128xf32>
    %49 = arith.maximumf %47, %48 : vector<16x128xf32>
    %c0_28 = arith.constant 0 : index
    %c0_29 = arith.constant 0 : index
    %50 = vector.load %arg11[%c0_28, %c0_29] : memref<1x128xf32, #tpu.memory_space<vmem>>, vector<1x128xf32>
    %c0_30 = arith.constant 0 : index
    %c0_31 = arith.constant 0 : index
    %51 = vector.load %arg12[%c0_30, %c0_31] : memref<1x128xf32, #tpu.memory_space<vmem>>, vector<1x128xf32>
    %cst_32 = arith.constant 1.000000e+00 : f32
    %cst_33 = arith.constant 1.600000e+01 : f32
    %52 = arith.divf %cst_32, %cst_33 : f32
    %cst_34 = arith.constant dense<0.000000e+00> : vector<128xf32>
    %53 = vector.multi_reduction <add>, %49, %cst_34 [0] : vector<16x128xf32> to vector<128xf32>
    %54 = vector.shape_cast %53 : vector<128xf32> to vector<1x128xf32>
    %55 = vector.broadcast %52 : f32 to vector<1x128xf32>
    %56 = arith.mulf %54, %55 : vector<1x128xf32>
    %57 = vector.broadcast %56 : vector<1x128xf32> to vector<16x128xf32>
    %58 = arith.subf %49, %57 : vector<16x128xf32>
    %59 = arith.mulf %58, %58 : vector<16x128xf32>
    %cst_35 = arith.constant dense<0.000000e+00> : vector<128xf32>
    %60 = vector.multi_reduction <add>, %59, %cst_35 [0] : vector<16x128xf32> to vector<128xf32>
    %61 = vector.shape_cast %60 : vector<128xf32> to vector<1x128xf32>
    %62 = vector.broadcast %52 : f32 to vector<1x128xf32>
    %63 = arith.mulf %61, %62 : vector<1x128xf32>
    %64 = vector.broadcast %56 : vector<1x128xf32> to vector<16x128xf32>
    %65 = arith.subf %49, %64 : vector<16x128xf32>
    %66 = vector.broadcast %50 : vector<1x128xf32> to vector<16x128xf32>
    %67 = arith.mulf %66, %65 : vector<16x128xf32>
    %cst_36 = arith.constant 9.99999974E-6 : f32
    %68 = vector.broadcast %cst_36 : f32 to vector<1x128xf32>
    %69 = arith.addf %63, %68 : vector<1x128xf32>
    %70 = math.rsqrt %69 : vector<1x128xf32>
    %71 = vector.broadcast %70 : vector<1x128xf32> to vector<16x128xf32>
    %72 = arith.mulf %67, %71 : vector<16x128xf32>
    %73 = vector.broadcast %51 : vector<1x128xf32> to vector<16x128xf32>
    %74 = arith.addf %72, %73 : vector<16x128xf32>
    %c0_37 = arith.constant 0 : index
    %c0_38 = arith.constant 0 : index
    %75 = vector.load %arg20[%c0_37, %c0_38] : memref<16x128xf32, #tpu.memory_space<vmem>>, vector<16x128xf32>
    tpu.vector_store %arg20[%c0_37, %c0_38], %74 {strides = array<i32>} : memref<16x128xf32, #tpu.memory_space<vmem>>, vector<16x128xf32>,
    %c0_i32 = arith.constant 0 : i32
    %c8_i32 = arith.constant 8 : i32
    %76 = arith.addi %c0_i32, %c8_i32 : i32
    %c1_i32 = arith.constant 1 : i32
    scf.for %arg21 = %c0_i32 to %76 step %c1_i32  : i32 {
      %c1_i32_58 = arith.constant 1 : i32
      %120 = arith.muli %arg21, %c1_i32_58 : i32
      %c0_i32_59 = arith.constant 0 : i32
      %121 = arith.addi %c0_i32_59, %120 : i32
      %122 = arith.index_cast %121 : i32 to index
      %123 = memref.load %arg1[%122] : memref<9xi32, #tpu.memory_space<smem>>
      %c1_i32_60 = arith.constant 1 : i32
      %124 = arith.addi %121, %c1_i32_60 : i32
      %125 = arith.index_cast %124 : i32 to index
      %126 = memref.load %arg1[%125] : memref<9xi32, #tpu.memory_space<smem>>
      %cst_61 = arith.constant 0xFF800000 : f32
      %127 = vector.broadcast %cst_61 : f32 to vector<1x128xf32>
      %128 = arith.subi %126, %123 : i32
      %129 = arith.addi %123, %128 : i32
      %c1_i32_62 = arith.constant 1 : i32
      %130 = scf.for %arg22 = %123 to %129 step %c1_i32_62 iter_args(%arg23 = %127) -> (vector<1x128xf32>)  : i32 {
        %133 = arith.index_cast %arg22 : i32 to index
        %c0_64 = arith.constant 0 : index
        %134 = vector.load %arg20[%133, %c0_64] : memref<16x128xf32, #tpu.memory_space<vmem>>, vector<1x128xf32>
        %135 = arith.maximumf %arg23, %134 : vector<1x128xf32>
        scf.yield %135 : vector<1x128xf32>
      }
      %131 = arith.index_cast %121 : i32 to index
      %c0_63 = arith.constant 0 : index
      %132 = vector.load %arg18[%131, %c0_63] : memref<8x128xf32, #tpu.memory_space<vmem>>, vector<1x128xf32>
      tpu.vector_store %arg18[%131, %c0_63], %130 {strides = array<i32>} : memref<8x128xf32, #tpu.memory_space<vmem>>, vector<1x128xf32>,
    }
    %c8_i32_39 = arith.constant 8 : i32
    %c0_40 = arith.constant 0 : index
    %77 = memref.load %arg0[%c0_40] : memref<1xi32, #tpu.memory_space<smem>>
    %c0_41 = arith.constant 0 : index
    %c0_42 = arith.constant 0 : index
    %78 = vector.load %arg13[%c0_41, %c0_42] : memref<8x768xbf16, #tpu.memory_space<vmem>>, vector<8x768xbf16>
    %c0_43 = arith.constant 0 : index
    %c0_44 = arith.constant 0 : index
    %79 = vector.load %arg14[%c0_43, %c0_44] : memref<768x128xbf16, #tpu.memory_space<vmem>>, vector<768x128xbf16>
    %cst_45 = arith.constant dense<0.000000e+00> : vector<8x128xf32>
    %80 = tpu.matmul %78, %79, %cst_45 {dimension_numbers = #tpu.dot_dimension_numbers<[1], [0], [0], [1], [0, 0, 1, 1], [], []>} : vector<8x768xbf16>, vector<768x128xbf16>, vector<8x128xf32> -> vector<8x128xf32>
    %c0_46 = arith.constant 0 : index
    %c0_47 = arith.constant 0 : index
    %81 = vector.load %arg15[%c0_46, %c0_47] : memref<1x128xf32, #tpu.memory_space<vmem>>, vector<1x128xf32>
    %82 = vector.broadcast %81 : vector<1x128xf32> to vector<8x128xf32>
    %83 = arith.addf %80, %82 : vector<8x128xf32>
    %84 = tpu.iota {dimensions = array<i32: 0>} : vector<8x1xi32>
    %85 = vector.broadcast %77 : i32 to vector<8x1xi32>
    %86 = arith.cmpi slt, %84, %85 : vector<8x1xi32>
    %87 = arith.extui %86 : vector<8x1xi1> to vector<8x1xi32>
    %88 = arith.sitofp %87 : vector<8x1xi32> to vector<8x1xf32>
    %c0_48 = arith.constant 0 : index
    %c0_49 = arith.constant 0 : index
    %89 = vector.load %arg16[%c0_48, %c0_49] : memref<1x128xf32, #tpu.memory_space<vmem>>, vector<1x128xf32>
    %c0_50 = arith.constant 0 : index
    %c0_51 = arith.constant 0 : index
    %90 = vector.load %arg17[%c0_50, %c0_51] : memref<1x128xf32, #tpu.memory_space<vmem>>, vector<1x128xf32>
    %91 = arith.sitofp %77 : i32 to f32
    %cst_52 = arith.constant 1.000000e+00 : f32
    %92 = arith.divf %cst_52, %91 : f32
    %93 = vector.broadcast %88 : vector<8x1xf32> to vector<8x128xf32>
    %94 = arith.mulf %83, %93 : vector<8x128xf32>
    %cst_53 = arith.constant dense<0.000000e+00> : vector<128xf32>
    %95 = vector.multi_reduction <add>, %94, %cst_53 [0] : vector<8x128xf32> to vector<128xf32>
    %96 = vector.shape_cast %95 : vector<128xf32> to vector<1x128xf32>
    %97 = vector.broadcast %92 : f32 to vector<1x128xf32>
    %98 = arith.mulf %96, %97 : vector<1x128xf32>
    %99 = vector.broadcast %98 : vector<1x128xf32> to vector<8x128xf32>
    %100 = arith.subf %83, %99 : vector<8x128xf32>
    %101 = vector.broadcast %88 : vector<8x1xf32> to vector<8x128xf32>
    %102 = arith.mulf %100, %101 : vector<8x128xf32>
    %103 = arith.mulf %102, %102 : vector<8x128xf32>
    %cst_54 = arith.constant dense<0.000000e+00> : vector<128xf32>
    %104 = vector.multi_reduction <add>, %103, %cst_54 [0] : vector<8x128xf32> to vector<128xf32>
    %105 = vector.shape_cast %104 : vector<128xf32> to vector<1x128xf32>
    %106 = vector.broadcast %92 : f32 to vector<1x128xf32>
    %107 = arith.mulf %105, %106 : vector<1x128xf32>
    %108 = vector.broadcast %98 : vector<1x128xf32> to vector<8x128xf32>
    %109 = arith.subf %83, %108 : vector<8x128xf32>
    %110 = vector.broadcast %89 : vector<1x128xf32> to vector<8x128xf32>
    %111 = arith.mulf %110, %109 : vector<8x128xf32>
    %cst_55 = arith.constant 9.99999974E-6 : f32
    %112 = vector.broadcast %cst_55 : f32 to vector<1x128xf32>
    %113 = arith.addf %107, %112 : vector<1x128xf32>
    %114 = math.rsqrt %113 : vector<1x128xf32>
    %115 = vector.broadcast %114 : vector<1x128xf32> to vector<8x128xf32>
    %116 = arith.mulf %111, %115 : vector<8x128xf32>
    %117 = vector.broadcast %90 : vector<1x128xf32> to vector<8x128xf32>
    %118 = arith.addf %116, %117 : vector<8x128xf32>
    %c0_56 = arith.constant 0 : index
    %c0_57 = arith.constant 0 : index
    %119 = vector.load %arg19[%c0_56, %c0_57] : memref<8x128xf32, #tpu.memory_space<vmem>>, vector<8x128xf32>
    tpu.vector_store %arg19[%c0_56, %c0_57], %118 {strides = array<i32>} : memref<8x128xf32, #tpu.memory_space<vmem>>, vector<8x128xf32>,
    return
  }
}

</mosaic_0001>

<llo_original>
// kernel: custom-call
$region0: #{custom-call}
  %s0 = inlined_call_operand.vmem [shape: u32[9], index: 0, kind: output, shape index: {}]

// kernel: bio_encoder_forward.1
$region0: #{bio_encoder_forward.1}
  #allocation0 [shape = 'u32[]', space=smem, size = 0x4, offset = 0x4, fixed_abs, tag = 'smem constant byte address 0x4 - core index']
  #allocation1 [shape = 'u32[72,128]{1,0:T(1,128)}', space=vmem, size = 0x9000, scoped, tag = 'internal scratch']
  #allocation2 [shape = 'f32[16,128]{1,0:T(8,128)}', space=vmem, size = 0x2000, scoped, tag = 'scratch operand']
  #allocation3 [shape = 's32[1]{0:T(128)S(6)}', space=smem, size = 0x200, scoped, tag = 'scoped memory for bio_encoder_forward.1']
  %s0 = inlined_call_operand.<no memory space> [shape: s32[1], index: 0, kind: input, shape index: {}]
  %s1 = inlined_call_operand.vmem [shape: s32[9], index: 1, kind: input, shape index: {}]
  %s2 = inlined_call_operand.vmem [shape: bf16[16,16], index: 2, kind: input, shape index: {}]
  %s3 = inlined_call_operand.vmem [shape: bf16[16,16], index: 3, kind: input, shape index: {}]
  %s4 = inlined_call_operand.vmem [shape: bf16[16,128], index: 4, kind: input, shape index: {}]
  %s5 = inlined_call_operand.vmem [shape: bf16[16,128], index: 5, kind: input, shape index: {}]
  %s6 = inlined_call_operand.vmem [shape: f32[1,128], index: 6, kind: input, shape index: {}]
  %s7 = inlined_call_operand.vmem [shape: f32[1,128], index: 7, kind: input, shape index: {}]
  %s8 = inlined_call_operand.vmem [shape: f32[1,128], index: 8, kind: input, shape index: {}]
  %s9 = inlined_call_operand.vmem [shape: bf16[256,128], index: 9, kind: input, shape index: {}]
  %s10 = inlined_call_operand.vmem [shape: f32[1,128], index: 10, kind: input, shape index: {}]
  %s11 = inlined_call_operand.vmem [shape: f32[1,128], index: 11, kind: input, shape index: {}]
  %s12 = inlined_call_operand.vmem [shape: f32[1,128], index: 12, kind: input, shape index: {}]
  %s13 = inlined_call_operand.vmem [shape: bf16[8,768], index: 13, kind: input, shape index: {}]
  %s14 = inlined_call_operand.vmem [shape: bf16[768,128], index: 14, kind: input, shape index: {}]
  %s15 = inlined_call_operand.vmem [shape: f32[1,128], index: 15, kind: input, shape index: {}]
  %s16 = inlined_call_operand.vmem [shape: f32[1,128], index: 16, kind: input, shape index: {}]
  %s17 = inlined_call_operand.vmem [shape: f32[1,128], index: 17, kind: input, shape index: {}]
  %s18 = inlined_call_operand.vmem [shape: f32[8,128], index: 18, kind: output, shape index: {0}]
  %s19 = inlined_call_operand.vmem [shape: f32[8,128], index: 19, kind: output, shape index: {1}]
  %20 = xla_tuple %s18, %s19
  %s21 = sld [smem:[#allocation0]]
  $region108: #{bio_encoder_forward.1} parent=0
    _
  %s23 = ssub.s32 1, %s21
  %s24 = scalar_select 0, %s23, %s21
  %25 = sst [smem:[#allocation3]] %s0
  $region1: #{bio_encoder_forward.1} parent=0
    #allocation4 [shape = 'u8[512]{0}', space=smem, size = 0x200, scoped, tag = 'input window, operand 1, single buffered']
    #allocation5 [shape = 's32[1]{0}', space=sflag, size = 0x4, scoped, tag = 'scoped memory for bio_encoder_forward.1']
    %26 = vsyncpa [#allocation5], 0
    // Predicated region
    $region2: #{bio_encoder_forward.1} parent=1 // pred_check
      _
    $region3: #{bio_encoder_forward.1} parent=1 // pred_check_branch
      %28 = sbr.rel (0) target = $region5
    $region4: #{bio_encoder_forward.1} parent=1 // pred_region
      _
    $region5: #{bio_encoder_forward.1} parent=1 // pred_fallthru
      _
    // Predicated region
    $region6: #{bio_encoder_forward.1} parent=1 // pred_check
      _
    $region7: #{bio_encoder_forward.1} parent=1 // pred_check_branch
      %30 = sbr.rel (0) target = $region9
    $region8: #{bio_encoder_forward.1} parent=1 // pred_region
      %32 = vsyncadd [#allocation5], 0
      %s34 = sshll.u32 %s1, 4
      %s35 = int_to_ptr.vmem [resolvable:$true] %s34
      %37 = dma.vmem_to_smem %s35, 16, [#allocation4], [#allocation5]
    $region9: #{bio_encoder_forward.1} parent=1 // pred_fallthru
      _
    // Predicated region
    $region10: #{bio_encoder_forward.1} parent=1 // pred_check
      _
    $region11: #{bio_encoder_forward.1} parent=1 // pred_check_branch
      %39 = sbr.rel (0) target = $region13
    $region12: #{bio_encoder_forward.1} parent=1 // pred_region
      _
    $region13: #{bio_encoder_forward.1} parent=1 // pred_fallthru
      _
    // Predicated region
    $region14: #{bio_encoder_forward.1} parent=1 // pred_check
      _
    $region15: #{bio_encoder_forward.1} parent=1 // pred_check_branch
      %41 = sbr.rel (0) target = $region17
    $region16: #{bio_encoder_forward.1} parent=1 // pred_region
      _
    $region17: #{bio_encoder_forward.1} parent=1 // pred_fallthru
      _
    // Predicated region
    $region18: #{bio_encoder_forward.1} parent=1 // pred_check
      _
    $region19: #{bio_encoder_forward.1} parent=1 // pred_check_branch
      %43 = sbr.rel (0) target = $region21
    $region20: #{bio_encoder_forward.1} parent=1 // pred_region
      _
    $region21: #{bio_encoder_forward.1} parent=1 // pred_fallthru
      _
    // Predicated region
    $region22: #{bio_encoder_forward.1} parent=1 // pred_check
      _
    $region23: #{bio_encoder_forward.1} parent=1 // pred_check_branch
      %45 = sbr.rel (0) target = $region25
    $region24: #{bio_encoder_forward.1} parent=1 // pred_region
      _
    $region25: #{bio_encoder_forward.1} parent=1 // pred_fallthru
      _
    // Predicated region
    $region26: #{bio_encoder_forward.1} parent=1 // pred_check
      _
    $region27: #{bio_encoder_forward.1} parent=1 // pred_check_branch
      %47 = sbr.rel (0) target = $region29
    $region28: #{bio_encoder_forward.1} parent=1 // pred_region
      _
    $region29: #{bio_encoder_forward.1} parent=1 // pred_fallthru
      _
    // Predicated region
    $region30: #{bio_encoder_forward.1} parent=1 // pred_check
      _
    $region31: #{bio_encoder_forward.1} parent=1 // pred_check_branch
      %49 = sbr.rel (0) target = $region33
    $region32: #{bio_encoder_forward.1} parent=1 // pred_region
      _
    $region33: #{bio_encoder_forward.1} parent=1 // pred_fallthru
      _
    // Predicated region
    $region34: #{bio_encoder_forward.1} parent=1 // pred_check
      _
    $region35: #{bio_encoder_forward.1} parent=1 // pred_check_branch
      %51 = sbr.rel (0) target = $region37
    $region36: #{bio_encoder_forward.1} parent=1 // pred_region
      _
    $region37: #{bio_encoder_forward.1} parent=1 // pred_fallthru
      _
    // Predicated region
    $region38: #{bio_encoder_forward.1} parent=1 // pred_check
      _
    $region39: #{bio_encoder_forward.1} parent=1 // pred_check_branch
      %53 = sbr.rel (0) target = $region41
    $region40: #{bio_encoder_forward.1} parent=1 // pred_region
      _
    $region41: #{bio_encoder_forward.1} parent=1 // pred_fallthru
      _
    // Predicated region
    $region42: #{bio_encoder_forward.1} parent=1 // pred_check
      _
    $region43: #{bio_encoder_forward.1} parent=1 // pred_check_branch
      %55 = sbr.rel (0) target = $region45
    $region44: #{bio_encoder_forward.1} parent=1 // pred_region
      _
    $region45: #{bio_encoder_forward.1} parent=1 // pred_fallthru
      _
    // Predicated region
    $region46: #{bio_encoder_forward.1} parent=1 // pred_check
      _
    $region47: #{bio_encoder_forward.1} parent=1 // pred_check_branch
      %57 = sbr.rel (0) target = $region49
    $region48: #{bio_encoder_forward.1} parent=1 // pred_region
      _
    $region49: #{bio_encoder_forward.1} parent=1 // pred_fallthru
      _
    // Predicated region
    $region50: #{bio_encoder_forward.1} parent=1 // pred_check
      _
    $region51: #{bio_encoder_forward.1} parent=1 // pred_check_branch
      %59 = sbr.rel (0) target = $region53
    $region52: #{bio_encoder_forward.1} parent=1 // pred_region
      _
    $region53: #{bio_encoder_forward.1} parent=1 // pred_fallthru
      _
    // Predicated region
    $region54: #{bio_encoder_forward.1} parent=1 // pred_check
      _
    $region55: #{bio_encoder_forward.1} parent=1 // pred_check_branch
      %61 = sbr.rel (0) target = $region57
    $region56: #{bio_encoder_forward.1} parent=1 // pred_region
      _
    $region57: #{bio_encoder_forward.1} parent=1 // pred_fallthru
      _
    // Predicated region
    $region58: #{bio_encoder_forward.1} parent=1 // pred_check
      _
    $region59: #{bio_encoder_forward.1} parent=1 // pred_check_branch
      %63 = sbr.rel (0) target = $region61
    $region60: #{bio_encoder_forward.1} parent=1 // pred_region
      _
    $region61: #{bio_encoder_forward.1} parent=1 // pred_fallthru
      _
    // Predicated region
    $region62: #{bio_encoder_forward.1} parent=1 // pred_check
      _
    $region63: #{bio_encoder_forward.1} parent=1 // pred_check_branch
      %65 = sbr.rel (0) target = $region65
    $region64: #{bio_encoder_forward.1} parent=1 // pred_region
      _
    $region65: #{bio_encoder_forward.1} parent=1 // pred_fallthru
      _
    // Predicated region
    $region66: #{bio_encoder_forward.1} parent=1 // pred_check
      _
    $region67: #{bio_encoder_forward.1} parent=1 // pred_check_branch
      %67 = sbr.rel (0) target = $region69
    $region68: #{bio_encoder_forward.1} parent=1 // pred_region
      _
    $region69: #{bio_encoder_forward.1} parent=1 // pred_fallthru
      _
    // Predicated region
    $region70: #{bio_encoder_forward.1} parent=1 // pred_check
      _
    $region71: #{bio_encoder_forward.1} parent=1 // pred_check_branch
      %69 = sbr.rel (0) target = $region73
    $region72: #{bio_encoder_forward.1} parent=1 // pred_region
      _
    $region73: #{bio_encoder_forward.1} parent=1 // pred_fallthru
      _
    // Predicated region
    $region74: #{bio_encoder_forward.1} parent=1 // pred_check
      _
    $region75: #{bio_encoder_forward.1} parent=1 // pred_check_branch
      %71 = sbr.rel (0) target = $region77
    $region76: #{bio_encoder_forward.1} parent=1 // pred_region
      %73 = dma.done [#allocation5], 16
    $region77: #{bio_encoder_forward.1} parent=1 // pred_fallthru
      _
    %74 = sfence
    %v76 = vld [vmem:[%s2] sm:$0xf]
    %v77 = vld [vmem:[%s2 + $0x4] sm:$0xf]
    %v78 = vld [vmem:[%s3] sm:$0xf]
    %v79 = vld [vmem:[%s3 + $0x4] sm:$0xf]
    %v82 = vunpack.c.l.b16 %v78
    %v83 = vunpack.c.l.b16 %v79
    %v84 = vpack.c.b16 %v83, %v82
    %v87 = vunpack.c.l.b16 %v76
    %v88 = vunpack.c.l.b16 %v77
    %v89 = vpack.c.b16 %v88, %v87
    %vm91 = vcmask 130048
    %v93 = vsel %vm91, %v84, 0
    %95 = vmatpush.bf16.msra.mxu0 0
    %96 = vmatpush.bf16.msra.mxu0 0
    %97 = vmatpush.bf16.msra.mxu0 0
    %98 = vmatpush.bf16.msra.mxu0 0
    %99 = vmatpush.bf16.msra.mxu0 0
    %100 = vmatpush.bf16.msra.mxu0 0
    %101 = vmatpush.bf16.msra.mxu0 0
    %102 = vmatpush.bf16.msra.mxu0 %v89
    %103 = vmatmul.bf16.gmra.mxu0 %v93
    %v104 = vpop.f32.mrf.mxu0
    %v105 = vadd.f32 0.0, %v104
    %v106 = vpop.f32.mrf.mxu0
    %v107 = vadd.f32 0.0, %v106
    %108 = vdwg.mxu0
    %v109 = vpack.c.bf16 %v107, %v105
    %v110 = vld [vmem:[%s4] sm:$0xf]
    %v111 = vld [vmem:[%s4 + $0x4] sm:$0xf]
    %v112 = vld [vmem:[%s5] sm:$0xf]
    %v113 = vld [vmem:[%s5 + $0x4] sm:$0xf]
    %v116 = vunpack.c.l.b16 %v112
    %v117 = vunpack.c.l.b16 %v113
    %v118 = vpack.c.b16 %v117, %v116
    %v121 = vsel %vm91, %v89, 0
    %123 = vmatpush.bf16.msra.mxu0 0
    %124 = vmatpush.bf16.msra.mxu0 0
    %125 = vmatpush.bf16.msra.mxu0 0
    %126 = vmatpush.bf16.msra.mxu0 0
    %127 = vmatpush.bf16.msra.mxu0 0
    %128 = vmatpush.bf16.msra.mxu0 0
    %129 = vmatpush.bf16.msra.mxu0 0
    %130 = vmatpush.bf16.msra.mxu0 %v118
    %131 = vmatmul.bf16.gmra.mxu0 %v121
    %v132 = vpop.f32.mrf.mxu0
    %v133 = vadd.f32 0.0, %v132
    %v134 = vpop.f32.mrf.mxu0
    %v135 = vadd.f32 0.0, %v134
    %136 = vdwg.mxu0
    %v139 = vunpack.c.l.b16 %v110
    %v140 = vunpack.c.l.b16 %v111
    %v141 = vpack.c.b16 %v140, %v139
    %v144 = vsel %vm91, %v109, 0
    %146 = vmatpush.bf16.msra.mxu0 0
    %147 = vmatpush.bf16.msra.mxu0 0
    %148 = vmatpush.bf16.msra.mxu0 0
    %149 = vmatpush.bf16.msra.mxu0 0
    %150 = vmatpush.bf16.msra.mxu0 0
    %151 = vmatpush.bf16.msra.mxu0 0
    %152 = vmatpush.bf16.msra.mxu0 0
    %153 = vmatpush.bf16.msra.mxu0 %v141
    %154 = vmatmul.bf16.gmra.mxu0 %v144
    %v155 = vpop.f32.mrf.mxu0
    %v156 = vadd.f32 %v133, %v155
    %v157 = vpop.f32.mrf.mxu0
    %v158 = vadd.f32 %v135, %v157
    %159 = vdwg.mxu0
    %v160 = vld [vmem:[%s6] sm:$0x1]
    %v162 = vperm.slane %v160, 0
    %v164 = vadd.f32 %v156, %v162
    %v165 = vadd.f32 %v158, %v162
    %v166 = vmax.f32 %v164, 0.0
    %v167 = vmax.f32 %v165, 0.0
    %v168 = vld [vmem:[%s7] sm:$0x1]
    %v169 = vld [vmem:[%s8] sm:$0x1]
    %v170 = vadd.f32 %v166, %v167
    %v171 = vrot.slane %v170, 4
    %v172 = vadd.f32 %v170, %v171
    %v173 = vrot.slane %v172, 2
    %v174 = vadd.f32 %v172, %v173
    %v175 = vrot.slane %v174, 1
    %v176 = vadd.f32 %v174, %v175
    %v177 = vmul.f32 %v176, 0.0625
    %v178 = vsub.f32 %v166, %v177
    %v179 = vsub.f32 %v167, %v177
    %v180 = vmul.f32 %v178, %v178
    %v181 = vmul.f32 %v179, %v179
    %v182 = vadd.f32 %v180, %v181
    %v183 = vrot.slane %v182, 4
    %v184 = vadd.f32 %v182, %v183
    %v185 = vrot.slane %v184, 2
    %v186 = vadd.f32 %v184, %v185
    %v187 = vrot.slane %v186, 1
    %v188 = vadd.f32 %v186, %v187
    %v189 = vmul.f32 %v188, 0.0625
    %v191 = vperm.slane %v168, 0
    %v193 = vmul.f32 %v191, %v178
    %v194 = vmul.f32 %v191, %v179
    %v195 = vadd.f32 %v189, 1e-05
    %v196 = vrsqrt.pop %v195
    %v197 = vmul.f32 %v196, %v195
    %v198 = vmul.f32 %v197, %v196
    %v199 = vmul.f32 0.5, %v198
    %v200 = vsub.f32 1.5, %v199
    %v201 = vmul.f32 %v196, %v200
    %vm202 = vweird.f32 %v195
    %vm203 = vweird.f32 %v196
    %vm204 = vmor %vm202, %vm203
    %v205 = vsel %vm204, %v196, %v201
    %v206 = vmul.f32 %v193, %v205
    %v207 = vmul.f32 %v194, %v205
    %v209 = vperm.slane %v169, 0
    %v211 = vadd.f32 %v206, %v209
    %v212 = vadd.f32 %v207, %v209
    %v213 = vpack.c.bf16 %v211, %v211
    %v214 = vpack.c.bf16 %v212, %v212
    %v217 = vunpack.c.l.b16 %v213
    %v218 = vunpack.c.l.b16 %v214
    %v219 = vpack.c.b16 %v218, %v217
    %221 = vmatpush.bf16.msra.mxu0 0
    %222 = vmatpush.bf16.msra.mxu0 0
    %223 = vmatpush.bf16.msra.mxu0 0
    %224 = vmatpush.bf16.msra.mxu0 0
    %225 = vmatpush.bf16.msra.mxu0 0
    %226 = vmatpush.bf16.msra.mxu0 0
    %227 = vmatpush.bf16.msra.mxu0 0
    %228 = vmatpush.bf16.msra.mxu0 %v219
    %229 = vmatmul.bf16.gmra.mxu0 %v93
    %v230 = vpop.f32.mrf.mxu0
    %v231 = vadd.f32 0.0, %v230
    %v232 = vpop.f32.mrf.mxu0
    %v233 = vadd.f32 0.0, %v232
    %234 = vdwg.mxu0
    %v235 = vpack.c.bf16 %v231, %v231
    %v236 = vpack.c.bf16 %v233, %v233
    %v239 = vunpack.c.l.b16 %v235
    %v240 = vunpack.c.l.b16 %v236
    %v241 = vpack.c.b16 %v240, %v239
    %v243 = vld [vmem:[%s9] sm:$0xf]
    %v244 = vld [vmem:[%s9 + $0x4] sm:$0xf]
    %v245 = vld [vmem:[%s9 + $0x8] sm:$0xf]
    %v246 = vld [vmem:[%s9 + $0xc] sm:$0xf]
    %v247 = vld [vmem:[%s9 + $0x10] sm:$0xf]
    %v248 = vld [vmem:[%s9 + $0x14] sm:$0xf]
    %v249 = vld [vmem:[%s9 + $0x18] sm:$0xf]
    %v250 = vld [vmem:[%s9 + $0x1c] sm:$0xf]
    %v251 = vld [vmem:[%s9 + $0x20] sm:$0xf]
    %v252 = vld [vmem:[%s9 + $0x24] sm:$0xf]
    %v253 = vld [vmem:[%s9 + $0x28] sm:$0xf]
    %v254 = vld [vmem:[%s9 + $0x2c] sm:$0xf]
    %v255 = vld [vmem:[%s9 + $0x30] sm:$0xf]
    %v256 = vld [vmem:[%s9 + $0x34] sm:$0xf]
    %v257 = vld [vmem:[%s9 + $0x38] sm:$0xf]
    %v258 = vld [vmem:[%s9 + $0x3c] sm:$0xf]
    %v259 = vld [vmem:[%s9 + $0x40] sm:$0xf]
    %v260 = vld [vmem:[%s9 + $0x44] sm:$0xf]
    %v261 = vld [vmem:[%s9 + $0x48] sm:$0xf]
    %v262 = vld [vmem:[%s9 + $0x4c] sm:$0xf]
    %v263 = vld [vmem:[%s9 + $0x50] sm:$0xf]
    %v264 = vld [vmem:[%s9 + $0x54] sm:$0xf]
    %v265 = vld [vmem:[%s9 + $0x58] sm:$0xf]
    %v266 = vld [vmem:[%s9 + $0x5c] sm:$0xf]
    %v267 = vld [vmem:[%s9 + $0x60] sm:$0xf]
    %v268 = vld [vmem:[%s9 + $0x64] sm:$0xf]
    %v269 = vld [vmem:[%s9 + $0x68] sm:$0xf]
    %v270 = vld [vmem:[%s9 + $0x6c] sm:$0xf]
    %v271 = vld [vmem:[%s9 + $0x70] sm:$0xf]
    %v272 = vld [vmem:[%s9 + $0x74] sm:$0xf]
    %v273 = vld [vmem:[%s9 + $0x78] sm:$0xf]
    %v274 = vld [vmem:[%s9 + $0x7c] sm:$0xf]
    %v275 = vld [vmem:[%s10] sm:$0x1]
    %v277 = vperm.slane %v275, 0
    %v311 = vunpack.c.l.b16 %v243
    %v312 = vunpack.c.l.b16 %v244
    %v313 = vunpack.c.l.b16 %v245
    %v314 = vunpack.c.l.b16 %v246
    %v315 = vunpack.c.l.b16 %v247
    %v316 = vunpack.c.l.b16 %v248
    %v317 = vunpack.c.l.b16 %v249
    %v318 = vunpack.c.l.b16 %v250
    %v319 = vunpack.c.l.b16 %v251
    %v320 = vunpack.c.l.b16 %v252
    %v321 = vunpack.c.l.b16 %v253
    %v322 = vunpack.c.l.b16 %v254
    %v323 = vunpack.c.l.b16 %v255
    %v324 = vunpack.c.l.b16 %v256
    %v325 = vunpack.c.l.b16 %v257
    %v326 = vunpack.c.l.b16 %v258
    %v327 = vunpack.c.l.b16 %v259
    %v328 = vunpack.c.l.b16 %v260
    %v329 = vunpack.c.l.b16 %v261
    %v330 = vunpack.c.l.b16 %v262
    %v331 = vunpack.c.l.b16 %v263
    %v332 = vunpack.c.l.b16 %v264
    %v333 = vunpack.c.l.b16 %v265
    %v334 = vunpack.c.l.b16 %v266
    %v335 = vunpack.c.l.b16 %v267
    %v336 = vunpack.c.l.b16 %v268
    %v337 = vunpack.c.l.b16 %v269
    %v338 = vunpack.c.l.b16 %v270
    %v339 = vunpack.c.l.b16 %v271
    %v340 = vunpack.c.l.b16 %v272
    %v341 = vunpack.c.l.b16 %v273
    %v342 = vunpack.c.l.b16 %v274
    %v343 = vpack.c.b16 %v312, %v311
    %v344 = vpack.c.b16 %v314, %v313
    %v345 = vpack.c.b16 %v316, %v315
    %v346 = vpack.c.b16 %v318, %v317
    %v347 = vpack.c.b16 %v320, %v319
    %v348 = vpack.c.b16 %v322, %v321
    %v349 = vpack.c.b16 %v324, %v323
    %v350 = vpack.c.b16 %v326, %v325
    %v351 = vpack.c.b16 %v328, %v327
    %v352 = vpack.c.b16 %v330, %v329
    %v353 = vpack.c.b16 %v332, %v331
    %v354 = vpack.c.b16 %v334, %v333
    %v355 = vpack.c.b16 %v336, %v335
    %v356 = vpack.c.b16 %v338, %v337
    %v357 = vpack.c.b16 %v340, %v339
    %v358 = vpack.c.b16 %v342, %v341
    %375 = vmatpush.bf16.msra.mxu0 %v350
    %376 = vmatpush.bf16.msra.mxu0 %v349
    %377 = vmatpush.bf16.msra.mxu0 %v348
    %378 = vmatpush.bf16.msra.mxu0 %v347
    %379 = vmatpush.bf16.msra.mxu0 %v346
    %380 = vmatpush.bf16.msra.mxu0 %v345
    %381 = vmatpush.bf16.msra.mxu0 %v344
    %382 = vmatpush.bf16.msra.mxu0 %v343
    %383 = vmatmul.bf16.gmra.mxu0 %v241
    %v384 = vpop.f32.mrf.mxu0
    %v385 = vadd.f32 %v277, %v384
    %v386 = vpop.f32.mrf.mxu0
    %v387 = vadd.f32 %v277, %v386
    %388 = vdwg.mxu0
    %389 = vmatpush.bf16.msra.mxu0 %v358
    %390 = vmatpush.bf16.msra.mxu0 %v357
    %391 = vmatpush.bf16.msra.mxu0 %v356
    %392 = vmatpush.bf16.msra.mxu0 %v355
    %393 = vmatpush.bf16.msra.mxu0 %v354
    %394 = vmatpush.bf16.msra.mxu0 %v353
    %395 = vmatpush.bf16.msra.mxu0 %v352
    %396 = vmatpush.bf16.msra.mxu0 %v351
    %397 = vmatmul.bf16.gmra.mxu0 %v219
    %v398 = vpop.f32.mrf.mxu0
    %v399 = vadd.f32 %v385, %v398
    %v400 = vpop.f32.mrf.mxu0
    %v401 = vadd.f32 %v387, %v400
    %402 = vdwg.mxu0
    %v403 = vmax.f32 %v399, 0.0
    %v404 = vmax.f32 %v401, 0.0
    %v405 = vld [vmem:[%s11] sm:$0x1]
    %v406 = vld [vmem:[%s12] sm:$0x1]
    %v407 = vadd.f32 %v403, %v404
    %v408 = vrot.slane %v407, 4
    %v409 = vadd.f32 %v407, %v408
    %v410 = vrot.slane %v409, 2
    %v411 = vadd.f32 %v409, %v410
    %v412 = vrot.slane %v411, 1
    %v413 = vadd.f32 %v411, %v412
    %v414 = vmul.f32 %v413, 0.0625
    %v415 = vsub.f32 %v403, %v414
    %v416 = vsub.f32 %v404, %v414
    %v417 = vmul.f32 %v415, %v415
    %v418 = vmul.f32 %v416, %v416
    %v419 = vadd.f32 %v417, %v418
    %v420 = vrot.slane %v419, 4
    %v421 = vadd.f32 %v419, %v420
    %v422 = vrot.slane %v421, 2
    %v423 = vadd.f32 %v421, %v422
    %v424 = vrot.slane %v423, 1
    %v425 = vadd.f32 %v423, %v424
    %v426 = vmul.f32 %v425, 0.0625
    %v428 = vperm.slane %v405, 0
    %v430 = vmul.f32 %v428, %v415
    %v431 = vmul.f32 %v428, %v416
    %v432 = vadd.f32 %v426, 1e-05
    %v433 = vrsqrt.pop %v432
    %v434 = vmul.f32 %v433, %v432
    %v435 = vmul.f32 %v434, %v433
    %v436 = vmul.f32 0.5, %v435
    %v437 = vsub.f32 1.5, %v436
    %v438 = vmul.f32 %v433, %v437
    %vm439 = vweird.f32 %v432
    %vm440 = vweird.f32 %v433
    %vm441 = vmor %vm439, %vm440
    %v442 = vsel %vm441, %v433, %v438
    %v443 = vmul.f32 %v430, %v442
    %v444 = vmul.f32 %v431, %v442
    %v446 = vperm.slane %v406, 0
    %v448 = vadd.f32 %v443, %v446
    %v449 = vadd.f32 %v444, %v446
    %450 = vst [vmem:[#allocation2] sm:$0xff] %v448
    %451 = vst [vmem:[#allocation2 + $0x8] sm:$0xff] %v449
    loop: start=0, step=1, limit=8
    $region78: #{bio_encoder_forward.1} parent=1 // loop_pre_header
      _
    $region79: #{bio_encoder_forward.1} parent=1 // loop_header
      %s453 = sphi 0, %s457
      %p454 = scmp.ge.s32.totalorder %s453, 8
    $region80: #{bio_encoder_forward.1} parent=1 // loop_header_branch
      %456 = sbr.rel (%p454) target = $region84
    $region81: #{bio_encoder_forward.1} parent=1 // loop_body
      %s458 = sld [smem:[#allocation4 + %s453]]
      %s459 = sadd.s32 %s453, 1
      %s460 = sld [smem:[#allocation4 + %s459]]
      // While loop
      $region85: #{bio_encoder_forward.1} parent=81 // loop_pre_header
        _
      $region86: #{bio_encoder_forward.1} parent=81 // loop_header
        %s462 = sphi %s458, %s464
        %p463 = scmp.ge.s32.totalorder %s462, %s460
        %v467 = vphi -inf, %v470
      $region87: #{bio_encoder_forward.1} parent=81 // loop_header_branch
        %466 = sbr.rel (%p463) target = $region91
      $region88: #{bio_encoder_forward.1} parent=81 // loop_body
        %s468 = scalar_lea.vmem [#allocation2], %s462
        %v469 = vld [vmem:[%s468] sm:$0x1]
        %v470 = vmax.f32 %v467, %v469
      $region89: #{bio_encoder_forward.1} parent=81 // loop_footer
        %s464 = sadd.s32 %s462, 1
      $region90: #{bio_encoder_forward.1} parent=81 // loop_footer_branch
        %461 = sbr.rel target = $region86
      $region91: #{bio_encoder_forward.1} parent=81 // loop_exit
        _
      %s471 = scalar_lea.vmem %s18, %s453
      %472 = vst [vmem:[%s471] sm:$0x1] %v467
    $region82: #{bio_encoder_forward.1} parent=1 // loop_footer
      %s457 = sadd.s32 1, %s453
    $region83: #{bio_encoder_forward.1} parent=1 // loop_footer_branch
      %452 = sbr.rel target = $region79
    $region84: #{bio_encoder_forward.1} parent=1 // loop_exit
      _
    %s473 = sld [smem:[#allocation3]]
    %v474 = vld [vmem:[%s13] sm:$0xff]
    %v475 = vld [vmem:[%s13 + $0x8] sm:$0xff]
    %v476 = vld [vmem:[%s13 + $0x10] sm:$0xff]
    %v477 = vld [vmem:[%s14] sm:$0xf]
    %v478 = vld [vmem:[%s14 + $0x4] sm:$0xf]
    %v479 = vld [vmem:[%s14 + $0x8] sm:$0xf]
    %v480 = vld [vmem:[%s14 + $0xc] sm:$0xf]
    %v481 = vld [vmem:[%s14 + $0x10] sm:$0xf]
    %v482 = vld [vmem:[%s14 + $0x14] sm:$0xf]
    %v483 = vld [vmem:[%s14 + $0x18] sm:$0xf]
    %v484 = vld [vmem:[%s14 + $0x1c] sm:$0xf]
    %v485 = vld [vmem:[%s14 + $0x20] sm:$0xf]
    %v486 = vld [vmem:[%s14 + $0x24] sm:$0xf]
    %v487 = vld [vmem:[%s14 + $0x28] sm:$0xf]
    %v488 = vld [vmem:[%s14 + $0x2c] sm:$0xf]
    %v489 = vld [vmem:[%s14 + $0x30] sm:$0xf]
    %v490 = vld [vmem:[%s14 + $0x34] sm:$0xf]
    %v491 = vld [vmem:[%s14 + $0x38] sm:$0xf]
    %v492 = vld [vmem:[%s14 + $0x3c] sm:$0xf]
    %v493 = vld [vmem:[%s14 + $0x40] sm:$0xf]
    %v494 = vld [vmem:[%s14 + $0x44] sm:$0xf]
    %v495 = vld [vmem:[%s14 + $0x48] sm:$0xf]
    %v496 = vld [vmem:[%s14 + $0x4c] sm:$0xf]
    %v497 = vld [vmem:[%s14 + $0x50] sm:$0xf]
    %v498 = vld [vmem:[%s14 + $0x54] sm:$0xf]
    %v499 = vld [vmem:[%s14 + $0x58] sm:$0xf]
    %v500 = vld [vmem:[%s14 + $0x5c] sm:$0xf]
    %v501 = vld [vmem:[%s14 + $0x60] sm:$0xf]
    %v502 = vld [vmem:[%s14 + $0x64] sm:$0xf]
    %v503 = vld [vmem:[%s14 + $0x68] sm:$0xf]
    %v504 = vld [vmem:[%s14 + $0x6c] sm:$0xf]
    %v505 = vld [vmem:[%s14 + $0x70] sm:$0xf]
    %v506 = vld [vmem:[%s14 + $0x74] sm:$0xf]
    %v507 = vld [vmem:[%s14 + $0x78] sm:$0xf]
    %v508 = vld [vmem:[%s14 + $0x7c] sm:$0xf]
    %v509 = vld [vmem:[%s14 + $0x80] sm:$0xf]
    %v510 = vld [vmem:[%s14 + $0x84] sm:$0xf]
    %v511 = vld [vmem:[%s14 + $0x88] sm:$0xf]
    %v512 = vld [vmem:[%s14 + $0x8c] sm:$0xf]
    %v513 = vld [vmem:[%s14 + $0x90] sm:$0xf]
    %v514 = vld [vmem:[%s14 + $0x94] sm:$0xf]
    %v515 = vld [vmem:[%s14 + $0x98] sm:$0xf]
    %v516 = vld [vmem:[%s14 + $0x9c] sm:$0xf]
    %v517 = vld [vmem:[%s14 + $0xa0] sm:$0xf]
    %v518 = vld [vmem:[%s14 + $0xa4] sm:$0xf]
    %v519 = vld [vmem:[%s14 + $0xa8] sm:$0xf]
    %v520 = vld [vmem:[%s14 + $0xac] sm:$0xf]
    %v521 = vld [vmem:[%s14 + $0xb0] sm:$0xf]
    %v522 = vld [vmem:[%s14 + $0xb4] sm:$0xf]
    %v523 = vld [vmem:[%s14 + $0xb8] sm:$0xf]
    %v524 = vld [vmem:[%s14 + $0xbc] sm:$0xf]
    %v525 = vld [vmem:[%s14 + $0xc0] sm:$0xf]
    %v526 = vld [vmem:[%s14 + $0xc4] sm:$0xf]
    %v527 = vld [vmem:[%s14 + $0xc8] sm:$0xf]
    %v528 = vld [vmem:[%s14 + $0xcc] sm:$0xf]
    %v529 = vld [vmem:[%s14 + $0xd0] sm:$0xf]
    %v530 = vld [vmem:[%s14 + $0xd4] sm:$0xf]
    %v531 = vld [vmem:[%s14 + $0xd8] sm:$0xf]
    %v532 = vld [vmem:[%s14 + $0xdc] sm:$0xf]
    %v533 = vld [vmem:[%s14 + $0xe0] sm:$0xf]
    %v534 = vld [vmem:[%s14 + $0xe4] sm:$0xf]
    %v535 = vld [vmem:[%s14 + $0xe8] sm:$0xf]
    %v536 = vld [vmem:[%s14 + $0xec] sm:$0xf]
    %v537 = vld [vmem:[%s14 + $0xf0] sm:$0xf]
    %v538 = vld [vmem:[%s14 + $0xf4] sm:$0xf]
    %v539 = vld [vmem:[%s14 + $0xf8] sm:$0xf]
    %v540 = vld [vmem:[%s14 + $0xfc] sm:$0xf]
    %v541 = vld [vmem:[%s14 + $0x100] sm:$0xf]
    %v542 = vld [vmem:[%s14 + $0x104] sm:$0xf]
    %v543 = vld [vmem:[%s14 + $0x108] sm:$0xf]
    %v544 = vld [vmem:[%s14 + $0x10c] sm:$0xf]
    %v545 = vld [vmem:[%s14 + $0x110] sm:$0xf]
    %v546 = vld [vmem:[%s14 + $0x114] sm:$0xf]
    %v547 = vld [vmem:[%s14 + $0x118] sm:$0xf]
    %v548 = vld [vmem:[%s14 + $0x11c] sm:$0xf]
    %v549 = vld [vmem:[%s14 + $0x120] sm:$0xf]
    %v550 = vld [vmem:[%s14 + $0x124] sm:$0xf]
    %v551 = vld [vmem:[%s14 + $0x128] sm:$0xf]
    %v552 = vld [vmem:[%s14 + $0x12c] sm:$0xf]
    %v553 = vld [vmem:[%s14 + $0x130] sm:$0xf]
    %v554 = vld [vmem:[%s14 + $0x134] sm:$0xf]
    %v555 = vld [vmem:[%s14 + $0x138] sm:$0xf]
    %v556 = vld [vmem:[%s14 + $0x13c] sm:$0xf]
    %v557 = vld [vmem:[%s14 + $0x140] sm:$0xf]
    %v558 = vld [vmem:[%s14 + $0x144] sm:$0xf]
    %v559 = vld [vmem:[%s14 + $0x148] sm:$0xf]
    %v560 = vld [vmem:[%s14 + $0x14c] sm:$0xf]
    %v561 = vld [vmem:[%s14 + $0x150] sm:$0xf]
    %v562 = vld [vmem:[%s14 + $0x154] sm:$0xf]
    %v563 = vld [vmem:[%s14 + $0x158] sm:$0xf]
    %v564 = vld [vmem:[%s14 + $0x15c] sm:$0xf]
    %v565 = vld [vmem:[%s14 + $0x160] sm:$0xf]
    %v566 = vld [vmem:[%s14 + $0x164] sm:$0xf]
    %v567 = vld [vmem:[%s14 + $0x168] sm:$0xf]
    %v568 = vld [vmem:[%s14 + $0x16c] sm:$0xf]
    %v569 = vld [vmem:[%s14 + $0x170] sm:$0xf]
    %v570 = vld [vmem:[%s14 + $0x174] sm:$0xf]
    %v571 = vld [vmem:[%s14 + $0x178] sm:$0xf]
    %v572 = vld [vmem:[%s14 + $0x17c] sm:$0xf]
    %v573 = vld [vmem:[%s15] sm:$0x1]
    %v575 = vperm.slane %v573, 0
    %v580 = vunpack.c.l.b16 %v474
    %v581 = vunpack.c.h.b16 %v474
    %v582 = vunpack.c.l.b16 %v475
    %v583 = vunpack.c.h.b16 %v475
    %v584 = vunpack.c.l.b16 %v476
    %v585 = vunpack.c.h.b16 %v476
    %v586 = vpack.c.b16 %v580, %v580
    %v587 = vpack.c.b16 %v581, %v581
    %v588 = vpack.c.b16 %v582, %v582
    %v589 = vpack.c.b16 %v583, %v583
    %v590 = vpack.c.b16 %v584, %v584
    %v591 = vpack.c.b16 %v585, %v585
    %v694 = vunpack.c.l.b16 %v477
    %v695 = vunpack.c.l.b16 %v478
    %v696 = vunpack.c.l.b16 %v479
    %v697 = vunpack.c.l.b16 %v480
    %v698 = vunpack.c.l.b16 %v481
    %v699 = vunpack.c.l.b16 %v482
    %v700 = vunpack.c.l.b16 %v483
    %v701 = vunpack.c.l.b16 %v484
    %v702 = vunpack.c.l.b16 %v485
    %v703 = vunpack.c.l.b16 %v486
    %v704 = vunpack.c.l.b16 %v487
    %v705 = vunpack.c.l.b16 %v488
    %v706 = vunpack.c.l.b16 %v489
    %v707 = vunpack.c.l.b16 %v490
    %v708 = vunpack.c.l.b16 %v491
    %v709 = vunpack.c.l.b16 %v492
    %v710 = vunpack.c.l.b16 %v493
    %v711 = vunpack.c.l.b16 %v494
    %v712 = vunpack.c.l.b16 %v495
    %v713 = vunpack.c.l.b16 %v496
    %v714 = vunpack.c.l.b16 %v497
    %v715 = vunpack.c.l.b16 %v498
    %v716 = vunpack.c.l.b16 %v499
    %v717 = vunpack.c.l.b16 %v500
    %v718 = vunpack.c.l.b16 %v501
    %v719 = vunpack.c.l.b16 %v502
    %v720 = vunpack.c.l.b16 %v503
    %v721 = vunpack.c.l.b16 %v504
    %v722 = vunpack.c.l.b16 %v505
    %v723 = vunpack.c.l.b16 %v506
    %v724 = vunpack.c.l.b16 %v507
    %v725 = vunpack.c.l.b16 %v508
    %v726 = vunpack.c.l.b16 %v509
    %v727 = vunpack.c.l.b16 %v510
    %v728 = vunpack.c.l.b16 %v511
    %v729 = vunpack.c.l.b16 %v512
    %v730 = vunpack.c.l.b16 %v513
    %v731 = vunpack.c.l.b16 %v514
    %v732 = vunpack.c.l.b16 %v515
    %v733 = vunpack.c.l.b16 %v516
    %v734 = vunpack.c.l.b16 %v517
    %v735 = vunpack.c.l.b16 %v518
    %v736 = vunpack.c.l.b16 %v519
    %v737 = vunpack.c.l.b16 %v520
    %v738 = vunpack.c.l.b16 %v521
    %v739 = vunpack.c.l.b16 %v522
    %v740 = vunpack.c.l.b16 %v523
    %v741 = vunpack.c.l.b16 %v524
    %v742 = vunpack.c.l.b16 %v525
    %v743 = vunpack.c.l.b16 %v526
    %v744 = vunpack.c.l.b16 %v527
    %v745 = vunpack.c.l.b16 %v528
    %v746 = vunpack.c.l.b16 %v529
    %v747 = vunpack.c.l.b16 %v530
    %v748 = vunpack.c.l.b16 %v531
    %v749 = vunpack.c.l.b16 %v532
    %v750 = vunpack.c.l.b16 %v533
    %v751 = vunpack.c.l.b16 %v534
    %v752 = vunpack.c.l.b16 %v535
    %v753 = vunpack.c.l.b16 %v536
    %v754 = vunpack.c.l.b16 %v537
    %v755 = vunpack.c.l.b16 %v538
    %v756 = vunpack.c.l.b16 %v539
    %v757 = vunpack.c.l.b16 %v540
    %v758 = vunpack.c.l.b16 %v541
    %v759 = vunpack.c.l.b16 %v542
    %v760 = vunpack.c.l.b16 %v543
    %v761 = vunpack.c.l.b16 %v544
    %v762 = vunpack.c.l.b16 %v545
    %v763 = vunpack.c.l.b16 %v546
    %v764 = vunpack.c.l.b16 %v547
    %v765 = vunpack.c.l.b16 %v548
    %v766 = vunpack.c.l.b16 %v549
    %v767 = vunpack.c.l.b16 %v550
    %v768 = vunpack.c.l.b16 %v551
    %v769 = vunpack.c.l.b16 %v552
    %v770 = vunpack.c.l.b16 %v553
    %v771 = vunpack.c.l.b16 %v554
    %v772 = vunpack.c.l.b16 %v555
    %v773 = vunpack.c.l.b16 %v556
    %v774 = vunpack.c.l.b16 %v557
    %v775 = vunpack.c.l.b16 %v558
    %v776 = vunpack.c.l.b16 %v559
    %v777 = vunpack.c.l.b16 %v560
    %v778 = vunpack.c.l.b16 %v561
    %v779 = vunpack.c.l.b16 %v562
    %v780 = vunpack.c.l.b16 %v563
    %v781 = vunpack.c.l.b16 %v564
    %v782 = vunpack.c.l.b16 %v565
    %v783 = vunpack.c.l.b16 %v566
    %v784 = vunpack.c.l.b16 %v567
    %v785 = vunpack.c.l.b16 %v568
    %v786 = vunpack.c.l.b16 %v569
    %v787 = vunpack.c.l.b16 %v570
    %v788 = vunpack.c.l.b16 %v571
    %v789 = vunpack.c.l.b16 %v572
    %v790 = vpack.c.b16 %v695, %v694
    %v791 = vpack.c.b16 %v697, %v696
    %v792 = vpack.c.b16 %v699, %v698
    %v793 = vpack.c.b16 %v701, %v700
    %v794 = vpack.c.b16 %v703, %v702
    %v795 = vpack.c.b16 %v705, %v704
    %v796 = vpack.c.b16 %v707, %v706
    %v797 = vpack.c.b16 %v709, %v708
    %v798 = vpack.c.b16 %v711, %v710
    %v799 = vpack.c.b16 %v713, %v712
    %v800 = vpack.c.b16 %v715, %v714
    %v801 = vpack.c.b16 %v717, %v716
    %v802 = vpack.c.b16 %v719, %v718
    %v803 = vpack.c.b16 %v721, %v720
    %v804 = vpack.c.b16 %v723, %v722
    %v805 = vpack.c.b16 %v725, %v724
    %v806 = vpack.c.b16 %v727, %v726
    %v807 = vpack.c.b16 %v729, %v728
    %v808 = vpack.c.b16 %v731, %v730
    %v809 = vpack.c.b16 %v733, %v732
    %v810 = vpack.c.b16 %v735, %v734
    %v811 = vpack.c.b16 %v737, %v736
    %v812 = vpack.c.b16 %v739, %v738
    %v813 = vpack.c.b16 %v741, %v740
    %v814 = vpack.c.b16 %v743, %v742
    %v815 = vpack.c.b16 %v745, %v744
    %v816 = vpack.c.b16 %v747, %v746
    %v817 = vpack.c.b16 %v749, %v748
    %v818 = vpack.c.b16 %v751, %v750
    %v819 = vpack.c.b16 %v753, %v752
    %v820 = vpack.c.b16 %v755, %v754
    %v821 = vpack.c.b16 %v757, %v756
    %v822 = vpack.c.b16 %v759, %v758
    %v823 = vpack.c.b16 %v761, %v760
    %v824 = vpack.c.b16 %v763, %v762
    %v825 = vpack.c.b16 %v765, %v764
    %v826 = vpack.c.b16 %v767, %v766
    %v827 = vpack.c.b16 %v769, %v768
    %v828 = vpack.c.b16 %v771, %v770
    %v829 = vpack.c.b16 %v773, %v772
    %v830 = vpack.c.b16 %v775, %v774
    %v831 = vpack.c.b16 %v777, %v776
    %v832 = vpack.c.b16 %v779, %v778
    %v833 = vpack.c.b16 %v781, %v780
    %v834 = vpack.c.b16 %v783, %v782
    %v835 = vpack.c.b16 %v785, %v784
    %v836 = vpack.c.b16 %v787, %v786
    %v837 = vpack.c.b16 %v789, %v788
    %886 = vmatpush.bf16.msra.mxu0 %v797
    %887 = vmatpush.bf16.msra.mxu0 %v796
    %888 = vmatpush.bf16.msra.mxu0 %v795
    %889 = vmatpush.bf16.msra.mxu0 %v794
    %890 = vmatpush.bf16.msra.mxu0 %v793
    %891 = vmatpush.bf16.msra.mxu0 %v792
    %892 = vmatpush.bf16.msra.mxu0 %v791
    %893 = vmatpush.bf16.msra.mxu0 %v790
    %894 = vmatmul.bf16.gmra.mxu0 %v586
    %v895 = vpop.f32.mrf.mxu0
    %v896 = vadd.f32 %v575, %v895
    %v897 = vpop.f32.mrf.mxu0
    %898 = vdwg.mxu0
    %899 = vmatpush.bf16.msra.mxu0 %v805
    %900 = vmatpush.bf16.msra.mxu0 %v804
    %901 = vmatpush.bf16.msra.mxu0 %v803
    %902 = vmatpush.bf16.msra.mxu0 %v802
    %903 = vmatpush.bf16.msra.mxu0 %v801
    %904 = vmatpush.bf16.msra.mxu0 %v800
    %905 = vmatpush.bf16.msra.mxu0 %v799
    %906 = vmatpush.bf16.msra.mxu0 %v798
    %907 = vmatmul.bf16.gmra.mxu0 %v587
    %v908 = vpop.f32.mrf.mxu0
    %v909 = vadd.f32 %v896, %v908
    %v910 = vpop.f32.mrf.mxu0
    %911 = vdwg.mxu0
    %912 = vmatpush.bf16.msra.mxu0 %v813
    %913 = vmatpush.bf16.msra.mxu0 %v812
    %914 = vmatpush.bf16.msra.mxu0 %v811
    %915 = vmatpush.bf16.msra.mxu0 %v810
    %916 = vmatpush.bf16.msra.mxu0 %v809
    %917 = vmatpush.bf16.msra.mxu0 %v808
    %918 = vmatpush.bf16.msra.mxu0 %v807
    %919 = vmatpush.bf16.msra.mxu0 %v806
    %920 = vmatmul.bf16.gmra.mxu0 %v588
    %v921 = vpop.f32.mrf.mxu0
    %v922 = vadd.f32 %v909, %v921
    %v923 = vpop.f32.mrf.mxu0
    %924 = vdwg.mxu0
    %925 = vmatpush.bf16.msra.mxu0 %v821
    %926 = vmatpush.bf16.msra.mxu0 %v820
    %927 = vmatpush.bf16.msra.mxu0 %v819
    %928 = vmatpush.bf16.msra.mxu0 %v818
    %929 = vmatpush.bf16.msra.mxu0 %v817
    %930 = vmatpush.bf16.msra.mxu0 %v816
    %931 = vmatpush.bf16.msra.mxu0 %v815
    %932 = vmatpush.bf16.msra.mxu0 %v814
    %933 = vmatmul.bf16.gmra.mxu0 %v589
    %v934 = vpop.f32.mrf.mxu0
    %v935 = vadd.f32 %v922, %v934
    %v936 = vpop.f32.mrf.mxu0
    %937 = vdwg.mxu0
    %938 = vmatpush.bf16.msra.mxu0 %v829
    %939 = vmatpush.bf16.msra.mxu0 %v828
    %940 = vmatpush.bf16.msra.mxu0 %v827
    %941 = vmatpush.bf16.msra.mxu0 %v826
    %942 = vmatpush.bf16.msra.mxu0 %v825
    %943 = vmatpush.bf16.msra.mxu0 %v824
    %944 = vmatpush.bf16.msra.mxu0 %v823
    %945 = vmatpush.bf16.msra.mxu0 %v822
    %946 = vmatmul.bf16.gmra.mxu0 %v590
    %v947 = vpop.f32.mrf.mxu0
    %v948 = vadd.f32 %v935, %v947
    %v949 = vpop.f32.mrf.mxu0
    %950 = vdwg.mxu0
    %951 = vmatpush.bf16.msra.mxu0 %v837
    %952 = vmatpush.bf16.msra.mxu0 %v836
    %953 = vmatpush.bf16.msra.mxu0 %v835
    %954 = vmatpush.bf16.msra.mxu0 %v834
    %955 = vmatpush.bf16.msra.mxu0 %v833
    %956 = vmatpush.bf16.msra.mxu0 %v832
    %957 = vmatpush.bf16.msra.mxu0 %v831
    %958 = vmatpush.bf16.msra.mxu0 %v830
    %959 = vmatmul.bf16.gmra.mxu0 %v591
    %v960 = vpop.f32.mrf.mxu0
    %v961 = vadd.f32 %v948, %v960
    %v962 = vpop.f32.mrf.mxu0
    %963 = vdwg.mxu0
    %v964 = vlaneseq
    %v965 = vshrl.u32 %v964, 7
    %v966 = vstv %s473
    %vm967 = vcmp.lt.s32.totalorder %v965, %v966
    %v968 = vsel %vm967, 1, 0
    %v969 = vcvt.s32.f32 %v968
    %v970 = vld [vmem:[%s16] sm:$0x1]
    %v971 = vld [vmem:[%s17] sm:$0x1]
    %s972 = scvt.s32.f32 %s473
    %v973 = vstv %s972
    %v974 = vrcp.pop %v973
    %v975 = vmul.f32 %v973, %v974
    %v976 = vsub.f32 1.0, %v975
    %v977 = vmul.f32 %v974, %v976
    %v978 = vadd.f32 %v974, %v977
    %vm979 = vweird.f32 %v973
    %vm980 = vweird.f32 %v974
    %vm981 = vmor %vm979, %vm980
    %v982 = vsel %vm981, %v974, %v978
    %v983 = vand.u32 2147483647, %v973
    %vm984 = vcmp.eq.f32.partialorder %v983, 8.507059e+37
    %v985 = vand.u32 %v973, 2147483648
    %v986 = vor.u32 1.1754944e-38, %v985
    %v987 = vsel %vm984, %v986, %v982
    %s988 = vtos %v987
    %v989 = vmul.f32 %v961, %v969
    %v990 = vrot.slane %v989, 4
    %v991 = vadd.f32 %v989, %v990
    %v992 = vrot.slane %v991, 2
    %v993 = vadd.f32 %v991, %v992
    %v994 = vrot.slane %v993, 1
    %v995 = vadd.f32 %v993, %v994
    %v996 = vstv %s988
    %v997 = vmul.f32 %v995, %v996
    %v998 = vsub.f32 %v961, %v997
    %v999 = vmul.f32 %v998, %v969
    %v1000 = vmul.f32 %v999, %v999
    %v1001 = vrot.slane %v1000, 4
    %v1002 = vadd.f32 %v1000, %v1001
    %v1003 = vrot.slane %v1002, 2
    %v1004 = vadd.f32 %v1002, %v1003
    %v1005 = vrot.slane %v1004, 1
    %v1006 = vadd.f32 %v1004, %v1005
    %v1007 = vmul.f32 %v1006, %v996
    %v1009 = vperm.slane %v970, 0
    %v1011 = vmul.f32 %v1009, %v998
    %v1012 = vadd.f32 %v1007, 1e-05
    %v1013 = vrsqrt.pop %v1012
    %v1014 = vmul.f32 %v1013, %v1012
    %v1015 = vmul.f32 %v1014, %v1013
    %v1016 = vmul.f32 0.5, %v1015
    %v1017 = vsub.f32 1.5, %v1016
    %v1018 = vmul.f32 %v1013, %v1017
    %vm1019 = vweird.f32 %v1012
    %vm1020 = vweird.f32 %v1013
    %vm1021 = vmor %vm1019, %vm1020
    %v1022 = vsel %vm1021, %v1013, %v1018
    %v1023 = vmul.f32 %v1011, %v1022
    %v1025 = vperm.slane %v971, 0
    %v1027 = vadd.f32 %v1023, %v1025
    %1028 = vst [vmem:[%s19] sm:$0xff] %v1027
    // Predicated region
    $region92: #{bio_encoder_forward.1} parent=1 // pred_check
      _
    $region93: #{bio_encoder_forward.1} parent=1 // pred_check_branch
      %1030 = sbr.rel (0) target = $region95
    $region94: #{bio_encoder_forward.1} parent=1 // pred_region
      _
    $region95: #{bio_encoder_forward.1} parent=1 // pred_fallthru
      _
    // Predicated region
    $region96: #{bio_encoder_forward.1} parent=1 // pred_check
      _
    $region97: #{bio_encoder_forward.1} parent=1 // pred_check_branch
      %1032 = sbr.rel (0) target = $region99
    $region98: #{bio_encoder_forward.1} parent=1 // pred_region
      _
    $region99: #{bio_encoder_forward.1} parent=1 // pred_fallthru
      _
    // Predicated region
    $region100: #{bio_encoder_forward.1} parent=1 // pred_check
      _
    $region101: #{bio_encoder_forward.1} parent=1 // pred_check_branch
      %1034 = sbr.rel (0) target = $region103
    $region102: #{bio_encoder_forward.1} parent=1 // pred_region
      _
    $region103: #{bio_encoder_forward.1} parent=1 // pred_fallthru
      _
    // Predicated region
    $region104: #{bio_encoder_forward.1} parent=1 // pred_check
      _
    $region105: #{bio_encoder_forward.1} parent=1 // pred_check_branch
      %1036 = sbr.rel (0) target = $region107
    $region106: #{bio_encoder_forward.1} parent=1 // pred_region
      _
    $region107: #{bio_encoder_forward.1} parent=1 // pred_fallthru
      _
    %1037 = vsyncpa [#allocation5], 1

</llo_original>
